<compile_context>
chip_gen: v7x
topology: tpu7x:2x2x1
jax: 0.10.0
libtpu: 0.0.40
codegen_flags: <defaults>
</compile_context>

<pallas_src>
import functools

import jax
import jax.numpy as jnp
from jax.experimental import pallas as pl
from jax.experimental.pallas import tpu as pltpu


def _round_up(x, m):
    return ((x + m - 1) // m) * m


def _choose_tile_b(batch):
    b8 = _round_up(batch, 8)
    if b8 <= 256:
        return b8            # one (or few) full-extent tiles
    if b8 <= 4096:
        return 256           # >=2 grid steps -> megacore sharding on v7x
    return 512               # amortize ~0.35us per-grid-step overhead


def _se_residual_mlp_kernel(x_ref, w1_ref, w2_ref, w3_ref, w4_ref,
                            bias_ref, out_ref, *, final_relu):
    f32 = jnp.float32
    h1 = w1_ref.shape[1]
    c = w2_ref.shape[1]
    h3 = w3_ref.shape[1]
    op = w4_ref.shape[1]

    x = x_ref[...]                      # [tile_b, C], compute dtype
    cdt = x.dtype

    # SE gate: Linear -> ReLU -> Linear -> Sigmoid
    h = jnp.dot(x, w1_ref[...], preferred_element_type=f32)
    h = jnp.maximum(h + bias_ref[0:1, :h1], 0.0)
    g = jnp.dot(h.astype(cdt), w2_ref[...], preferred_element_type=f32)
    gate = jax.nn.sigmoid(g + bias_ref[1:2, :c])

    # Fused residual: gate*x + x == x * (gate + 1)
    y = (x.astype(f32) * (gate + 1.0)).astype(cdt)

    # MLP: Linear -> ReLU -> Linear [-> ReLU]   (last layer padded to 128 lanes)
    t = jnp.dot(y, w3_ref[...], preferred_element_type=f32)
    t = jnp.maximum(t + bias_ref[2:3, :h3], 0.0)
    s = jnp.dot(t.astype(cdt), w4_ref[...], preferred_element_type=f32)
    s = s + bias_ref[3:4, :op]
    if final_relu:
        s = jnp.maximum(s, 0.0)
    out_ref[...] = s.astype(out_ref.dtype)


def se_residual_mlp(x, params, *, final_relu, tile_b=None,
                    compute_dtype=jnp.float32):
    """x: [B, C] f32.  params: (w1,b1,w2,b2,w3,b3,w4,b4).  Returns [B, out_dim]."""
    B, C = x.shape
    (w1, b1, w2, b2, w3, b3, w4, b4) = params
    h1 = w1.shape[1]
    h3 = w3.shape[1]
    out_dim = w4.shape[1]

    # --- lane-dense output: zero-pad the last layer to a multiple of 128 ---
    out_pad = max(128, _round_up(out_dim, 128))
    if out_pad != out_dim:
        w4 = jnp.pad(w4, ((0, 0), (0, out_pad - out_dim)))
        b4 = jnp.pad(b4, ((0, 0), (0, out_pad - out_dim)))

    # --- batch tiling (multiple of 8 sublanes) + zero-pad trailing rows ---
    if tile_b is None:
        tile_b = _choose_tile_b(B)
    tile_b = _round_up(min(tile_b, _round_up(B, 8)), 8)
    B_pad = _round_up(B, tile_b)
    if B_pad != B:
        x = jnp.pad(x, ((0, B_pad - B), (0, 0)))

    # --- dtype handling: bf16 streams/weights (v6e/v7x), f32 biases/acc ---
    x = x.astype(compute_dtype)
    w1c = w1.astype(compute_dtype)
    w2c = w2.astype(compute_dtype)
    w3c = w3.astype(compute_dtype)
    w4c = w4.astype(compute_dtype)

    # --- coalesce the four bias vectors into one (4, Wmax) f32 block ---
    wmax = max(h1, C, h3, out_pad)

    def pad_bias(b):
        return jnp.pad(b.astype(jnp.float32), ((0, 0), (0, wmax - b.shape[1])))

    bias_pack = jnp.concatenate(
        [pad_bias(b1), pad_bias(b2), pad_bias(b3), pad_bias(b4)], axis=0)

    def rep(shape):   # full-tensor block, constant block index (no re-fetch)
        return pl.BlockSpec(shape, lambda i: (0, 0))

    grid = (B_pad // tile_b,)
    kernel = functools.partial(_se_residual_mlp_kernel, final_relu=final_relu)
    out = pl.pallas_call(
        kernel,
        out_shape=jax.ShapeDtypeStruct((B_pad, out_pad), compute_dtype),
        grid_spec=pltpu.PrefetchScalarGridSpec(
            num_scalar_prefetch=0,
            grid=grid,
            in_specs=[
                pl.BlockSpec((tile_b, C), lambda i: (i, 0)),   # x
                rep((C, h1)),                                  # w1
                rep((h1, C)),                                  # w2
                rep((C, h3)),                                  # w3
                rep((h3, out_pad)),                            # w4 (padded)
                rep((4, wmax)),                                # bias pack
            ],
            out_specs=pl.BlockSpec((tile_b, out_pad), lambda i: (i, 0)),
        ),
        compiler_params=pltpu.CompilerParams(
            dimension_semantics=("parallel",)),
    )(x, w1c, w2c, w3c, w4c, bias_pack)

    # slice off batch padding and the lane padding of the last layer
    return out[:B, :out_dim]


def se_tensor_network(e1, e2, params, **kw):
    """SETensorNetworkModule.forward (fc0 is unused in the PyTorch forward)."""
    x = jnp.concatenate([e1, e2], axis=1)          # concat once, in the wrapper
    return se_residual_mlp(x, params, final_relu=True, **kw)


def egsc_scoring_head(scores, params, **kw):
    """EGSC tail: score_attention-gated residual + fc_first(+ReLU) + scoring."""
    out = se_residual_mlp(scores, params, final_relu=False, **kw)   # [B, 1]
    return out[:, 0]                                                # .view(-1)


# ----------------------------- parameter init -----------------------------

def _linear(kw_, kb_, fan_in, fan_out):
    bound = 1.0 / jnp.sqrt(fan_in)
    w = jax.random.uniform(kw_, (fan_in, fan_out), jnp.float32, -bound, bound)
    b = jax.random.uniform(kb_, (1, fan_out), jnp.float32, -bound, bound)
    return w, b


def init_tensor_network_params(key, dim_size):
    channel = 2 * dim_size
    hidden = channel // 4
    out_dim = dim_size // 2
    ks = jax.random.split(key, 8)
    w1, b1 = _linear(ks[0], ks[1], channel, hidden)    # fc_se[0]
    w2, b2 = _linear(ks[2], ks[3], hidden, channel)    # fc_se[2]
    w3, b3 = _linear(ks[4], ks[5], channel, channel)   # fc1[0]
    w4, b4 = _linear(ks[6], ks[7], channel, out_dim)   # fc1[2]
    return (w1, b1, w2, b2, w3, b3, w4, b4)


def init_head_params(key, feature_count, bottle_neck):
    hidden = feature_count // 4
    ks = jax.random.split(key, 8)
    w1, b1 = _linear(ks[0], ks[1], feature_count, hidden)        # score_attention.fc[0]
    w2, b2 = _linear(ks[2], ks[3], hidden, feature_count)        # score_attention.fc[2]
    w3, b3 = _linear(ks[4], ks[5], feature_count, bottle_neck)   # fully_connected_first
    w4, b4 = _linear(ks[6], ks[7], bottle_neck, 1)               # scoring_layer
    return (w1, b1, w2, b2, w3, b3, w4, b4)


# ------------------------------- references -------------------------------

def reference_se_residual_mlp(x, params, final_relu):
    (w1, b1, w2, b2, w3, b3, w4, b4) = params
    gate = jax.nn.sigmoid(jax.nn.relu(x @ w1 + b1) @ w2 + b2)
    y = gate * x + x
    t = jax.nn.relu(y @ w3 + b3)
    s = t @ w4 + b4
    return jax.nn.relu(s) if final_relu else s


if __name__ == "__main__":
    key = jax.random.PRNGKey(0)
    k1, k2, kp, k3, k4, ks_in, ks_p = jax.random.split(key, 7)

    # ---- SETensorNetworkModule (per GNN layer) ----
    dim_size = 32          # channel = 64, hidden = 16, out = 16
    batch = 8
    e1 = jax.random.normal(k1, (batch, dim_size), jnp.float32)
    e2 = jax.random.normal(k2, (batch, dim_size), jnp.float32)
    tn_params = init_tensor_network_params(kp, dim_size)
    ref = reference_se_residual_mlp(jnp.concatenate([e1, e2], 1), tn_params, True)

    out = jax.block_until_ready(se_tensor_network(e1, e2, tn_params))
    assert out.shape == (batch, dim_size // 2)
    assert jnp.allclose(out, ref, atol=1e-5, rtol=1e-5)

    # multi-step grid + batch-padding path (B not a multiple of tile_b)
    big_b = 200
    e1b = jax.random.normal(k3, (big_b, dim_size), jnp.float32)
    e2b = jax.random.normal(k4, (big_b, dim_size), jnp.float32)
    out_b = jax.block_until_ready(
        se_tensor_network(e1b, e2b, tn_params, tile_b=64))
    ref_b = reference_se_residual_mlp(
        jnp.concatenate([e1b, e2b], 1), tn_params, True)
    assert out_b.shape == (big_b, dim_size // 2)
    assert jnp.allclose(out_b, ref_b, atol=1e-5, rtol=1e-5)

    # bf16 compute path (v6e/v7x MXU-native), looser tolerance vs. f32 reference
    out_bf = jax.block_until_ready(
        se_tensor_network(e1, e2, tn_params, compute_dtype=jnp.bfloat16))
    assert jnp.allclose(out_bf.astype(jnp.float32), ref, atol=5e-2, rtol=5e-2)

    # ---- EGSC scoring head: SEAttentionModule gate + fc_first + scoring ----
    feature_count = 56     # sum(filters)//2 for filters = [64, 32, 16]
    bottle_neck = 16
    scores_in = jax.random.normal(ks_in, (batch, feature_count), jnp.float32)
    head_params = init_head_params(ks_p, feature_count, bottle_neck)
    head_ref = reference_se_residual_mlp(scores_in, head_params, False).reshape(-1)
    head_out = jax.block_until_ready(egsc_scoring_head(scores_in, head_params))
    assert head_out.shape == (batch,)
    assert jnp.allclose(head_out, head_ref, atol=1e-5, rtol=1e-5)

    print("KERNEL_OK")
</pallas_src>

<mosaic_0001>
module attributes {stable_mosaic.version = 11 : i64} {
  func.func @_se_residual_mlp_kernel(%arg0: i32, %arg1: memref<8x64xf32, #tpu.memory_space<vmem>>, %arg2: memref<64x16xf32, #tpu.memory_space<vmem>>, %arg3: memref<16x64xf32, #tpu.memory_space<vmem>>, %arg4: memref<64x64xf32, #tpu.memory_space<vmem>>, %arg5: memref<64x128xf32, #tpu.memory_space<vmem>>, %arg6: memref<4x128xf32, #tpu.memory_space<vmem>>, %arg7: memref<8x128xf32, #tpu.memory_space<vmem>>) attributes {dimension_semantics = [#tpu.dimension_semantics<parallel>], iteration_bounds = array<i64: 1>, scalar_prefetch = 0 : i64, scratch_operands = 0 : i64, tpu.core_type = #tpu.core_type<tc>, window_params = [{transform_indices = @transform_0, window_bounds = array<i64: 8, 64>}, {pipeline_mode = #tpu.pipeline_mode<synchronous>, transform_indices = @transform_1, window_bounds = array<i64: 64, 16>}, {pipeline_mode = #tpu.pipeline_mode<synchronous>, transform_indices = @transform_2, window_bounds = array<i64: 16, 64>}, {pipeline_mode = #tpu.pipeline_mode<synchronous>, transform_indices = @transform_3, window_bounds = array<i64: 64, 64>}, {pipeline_mode = #tpu.pipeline_mode<synchronous>, transform_indices = @transform_4, window_bounds = array<i64: 64, 128>}, {pipeline_mode = #tpu.pipeline_mode<synchronous>, transform_indices = @transform_5, window_bounds = array<i64: 4, 128>}, {transform_indices = @transform_6, window_bounds = array<i64: 8, 128>}]} {
    %c0 = arith.constant 0 : index
    %c0_0 = arith.constant 0 : index
    %0 = vector.load %arg1[%c0, %c0_0] : memref<8x64xf32, #tpu.memory_space<vmem>>, vector<8x64xf32>
    %c0_1 = arith.constant 0 : index
    %c0_2 = arith.constant 0 : index
    %1 = vector.load %arg2[%c0_1, %c0_2] : memref<64x16xf32, #tpu.memory_space<vmem>>, vector<64x16xf32>
    %cst = arith.constant dense<0.000000e+00> : vector<8x16xf32>
    %2 = tpu.matmul %0, %1, %cst {dimension_numbers = #tpu.dot_dimension_numbers<[1], [0], [0], [1], [0, 0, 1, 1], [], []>} : vector<8x64xf32>, vector<64x16xf32>, vector<8x16xf32> -> vector<8x16xf32>
    %c0_3 = arith.constant 0 : index
    %c0_4 = arith.constant 0 : index
    %3 = vector.load %arg6[%c0_3, %c0_4] : memref<4x128xf32, #tpu.memory_space<vmem>>, vector<1x16xf32>
    %4 = vector.broadcast %3 : vector<1x16xf32> to vector<8x16xf32>
    %5 = arith.addf %2, %4 : vector<8x16xf32>
    %cst_5 = arith.constant 0.000000e+00 : f32
    %6 = vector.broadcast %cst_5 : f32 to vector<8x16xf32>
    %7 = arith.maximumf %5, %6 : vector<8x16xf32>
    %c0_6 = arith.constant 0 : index
    %c0_7 = arith.constant 0 : index
    %8 = vector.load %arg3[%c0_6, %c0_7] : memref<16x64xf32, #tpu.memory_space<vmem>>, vector<16x64xf32>
    %cst_8 = arith.constant dense<0.000000e+00> : vector<8x64xf32>
    %9 = tpu.matmul %7, %8, %cst_8 {dimension_numbers = #tpu.dot_dimension_numbers<[1], [0], [0], [1], [0, 0, 1, 1], [], []>} : vector<8x16xf32>, vector<16x64xf32>, vector<8x64xf32> -> vector<8x64xf32>
    %c1 = arith.constant 1 : index
    %c0_9 = arith.constant 0 : index
    %10 = vector.load %arg6[%c1, %c0_9] : memref<4x128xf32, #tpu.memory_space<vmem>>, vector<1x64xf32>
    %11 = vector.broadcast %10 : vector<1x64xf32> to vector<8x64xf32>
    %12 = arith.addf %9, %11 : vector<8x64xf32>
    %13 = arith.negf %12 : vector<8x64xf32>
    %14 = math.exp %13 : vector<8x64xf32>
    %cst_10 = arith.constant 1.000000e+00 : f32
    %15 = vector.broadcast %cst_10 : f32 to vector<8x64xf32>
    %16 = arith.addf %15, %14 : vector<8x64xf32>
    %17 = arith.divf %15, %16 : vector<8x64xf32>
    %cst_11 = arith.constant 1.000000e+00 : f32
    %18 = vector.broadcast %cst_11 : f32 to vector<8x64xf32>
    %19 = arith.addf %17, %18 : vector<8x64xf32>
    %20 = arith.mulf %0, %19 : vector<8x64xf32>
    %c0_12 = arith.constant 0 : index
    %c0_13 = arith.constant 0 : index
    %21 = vector.load %arg4[%c0_12, %c0_13] : memref<64x64xf32, #tpu.memory_space<vmem>>, vector<64x64xf32>
    %cst_14 = arith.constant dense<0.000000e+00> : vector<8x64xf32>
    %22 = tpu.matmul %20, %21, %cst_14 {dimension_numbers = #tpu.dot_dimension_numbers<[1], [0], [0], [1], [0, 0, 1, 1], [], []>} : vector<8x64xf32>, vector<64x64xf32>, vector<8x64xf32> -> vector<8x64xf32>
    %c2 = arith.constant 2 : index
    %c0_15 = arith.constant 0 : index
    %23 = vector.load %arg6[%c2, %c0_15] : memref<4x128xf32, #tpu.memory_space<vmem>>, vector<1x64xf32>
    %24 = vector.broadcast %23 : vector<1x64xf32> to vector<8x64xf32>
    %25 = arith.addf %22, %24 : vector<8x64xf32>
    %cst_16 = arith.constant 0.000000e+00 : f32
    %26 = vector.broadcast %cst_16 : f32 to vector<8x64xf32>
    %27 = arith.maximumf %25, %26 : vector<8x64xf32>
    %c0_17 = arith.constant 0 : index
    %c0_18 = arith.constant 0 : index
    %28 = vector.load %arg5[%c0_17, %c0_18] : memref<64x128xf32, #tpu.memory_space<vmem>>, vector<64x128xf32>
    %cst_19 = arith.constant dense<0.000000e+00> : vector<8x128xf32>
    %29 = tpu.matmul %27, %28, %cst_19 {dimension_numbers = #tpu.dot_dimension_numbers<[1], [0], [0], [1], [0, 0, 1, 1], [], []>} : vector<8x64xf32>, vector<64x128xf32>, vector<8x128xf32> -> vector<8x128xf32>
    %c3 = arith.constant 3 : index
    %c0_20 = arith.constant 0 : index
    %30 = vector.load %arg6[%c3, %c0_20] : memref<4x128xf32, #tpu.memory_space<vmem>>, vector<1x128xf32>
    %31 = vector.broadcast %30 : vector<1x128xf32> to vector<8x128xf32>
    %32 = arith.addf %29, %31 : vector<8x128xf32>
    %cst_21 = arith.constant 0.000000e+00 : f32
    %33 = vector.broadcast %cst_21 : f32 to vector<8x128xf32>
    %34 = arith.maximumf %32, %33 : vector<8x128xf32>
    %c0_22 = arith.constant 0 : index
    %c0_23 = arith.constant 0 : index
    %35 = vector.load %arg7[%c0_22, %c0_23] : memref<8x128xf32, #tpu.memory_space<vmem>>, vector<8x128xf32>
    tpu.vector_store %arg7[%c0_22, %c0_23], %34 {strides = array<i32>} : memref<8x128xf32, #tpu.memory_space<vmem>>, vector<8x128xf32>,
    return
  }
  func.func @transform_0(%arg0: i32) -> (i32, i32) {
    %c0_i32 = arith.constant 0 : i32
    %c0_i32_0 = arith.constant 0 : i32
    return %arg0, %c0_i32 : i32, i32
  }
  func.func @transform_1(%arg0: i32) -> (i32, i32) {
    %c0_i32 = arith.constant 0 : i32
    %c0_i32_0 = arith.constant 0 : i32
    %c0_i32_1 = arith.constant 0 : i32
    return %c0_i32, %c0_i32_0 : i32, i32
  }
  func.func @transform_2(%arg0: i32) -> (i32, i32) {
    %c0_i32 = arith.constant 0 : i32
    %c0_i32_0 = arith.constant 0 : i32
    %c0_i32_1 = arith.constant 0 : i32
    return %c0_i32, %c0_i32_0 : i32, i32
  }
  func.func @transform_3(%arg0: i32) -> (i32, i32) {
    %c0_i32 = arith.constant 0 : i32
    %c0_i32_0 = arith.constant 0 : i32
    %c0_i32_1 = arith.constant 0 : i32
    return %c0_i32, %c0_i32_0 : i32, i32
  }
  func.func @transform_4(%arg0: i32) -> (i32, i32) {
    %c0_i32 = arith.constant 0 : i32
    %c0_i32_0 = arith.constant 0 : i32
    %c0_i32_1 = arith.constant 0 : i32
    return %c0_i32, %c0_i32_0 : i32, i32
  }
  func.func @transform_5(%arg0: i32) -> (i32, i32) {
    %c0_i32 = arith.constant 0 : i32
    %c0_i32_0 = arith.constant 0 : i32
    %c0_i32_1 = arith.constant 0 : i32
    return %c0_i32, %c0_i32_0 : i32, i32
  }
  func.func @transform_6(%arg0: i32) -> (i32, i32) {
    %c0_i32 = arith.constant 0 : i32
    %c0_i32_0 = arith.constant 0 : i32
    return %arg0, %c0_i32 : i32, i32
  }
}

</mosaic_0001>

<llo_original>
// kernel: tpu_custom_call.1
$region0: #{tpu_custom_call.1}
  #allocation0 [shape = 'u32[]', space=smem, size = 0x4, offset = 0x4, fixed_abs, tag = 'smem constant byte address 0x4 - core index']
  #allocation1 [shape = 'u32[144,128]{1,0:T(1,128)}', space=vmem, size = 0x12000, scoped, tag = 'internal scratch']
  %s0 = inlined_call_operand.vmem [shape: f32[8,64], index: 0, kind: input, shape index: {}]
  %s1 = inlined_call_operand.vmem [shape: f32[64,16], index: 1, kind: input, shape index: {}]
  %s2 = inlined_call_operand.vmem [shape: f32[16,64], index: 2, kind: input, shape index: {}]
  %s3 = inlined_call_operand.vmem [shape: f32[64,64], index: 3, kind: input, shape index: {}]
  %s4 = inlined_call_operand.hbm [shape: f32[64,128], index: 4, kind: input, shape index: {}]
  %s5 = inlined_call_operand.vmem [shape: f32[4,128], index: 5, kind: input, shape index: {}]
  %s6 = inlined_call_operand.hbm [shape: f32[8,128], index: 6, kind: output, shape index: {}]
  %s7 = sld [smem:[#allocation0]]
  $region38: #{tpu_custom_call.1} parent=0
    _
  %s9 = ssub.s32 1, %s7
  %s10 = scalar_select 0, %s9, %s7
  $region1: #{tpu_custom_call.1} parent=0
    #allocation2 [shape = 'u8[32768]{0}', space=vmem, size = 0x8000, scoped, tag = 'input window, operand 4, single buffered']
    #allocation3 [shape = 's32[1]{0}', space=sflag, size = 0x4, scoped, tag = 'scoped memory for tpu_custom_call.1']
    #allocation4 [shape = 's32[1]{0}', space=sflag, size = 0x4, scoped, tag = 'scoped memory for tpu_custom_call.1']
    #allocation5 [shape = 'u8[4096]{0}', space=vmem, size = 0x1000, scoped, tag = 'output window, operand 0, single buffered']
    %11 = vsyncpa [#allocation3], 0
    %12 = vsyncpa [#allocation4], 0
    // Predicated region
    $region2: #{tpu_custom_call.1} parent=1 // pred_check
      _
    $region3: #{tpu_custom_call.1} parent=1 // pred_check_branch
      %14 = sbr.rel (0) target = $region5
    $region4: #{tpu_custom_call.1} parent=1 // pred_region
      _
    $region5: #{tpu_custom_call.1} parent=1 // pred_fallthru
      _
    // Predicated region
    $region6: #{tpu_custom_call.1} parent=1 // pred_check
      _
    $region7: #{tpu_custom_call.1} parent=1 // pred_check_branch
      %16 = sbr.rel (0) target = $region9
    $region8: #{tpu_custom_call.1} parent=1 // pred_region
      _
    $region9: #{tpu_custom_call.1} parent=1 // pred_fallthru
      _
    // Predicated region
    $region10: #{tpu_custom_call.1} parent=1 // pred_check
      _
    $region11: #{tpu_custom_call.1} parent=1 // pred_check_branch
      %18 = sbr.rel (0) target = $region13
    $region12: #{tpu_custom_call.1} parent=1 // pred_region
      _
    $region13: #{tpu_custom_call.1} parent=1 // pred_fallthru
      _
    // Predicated region
    $region14: #{tpu_custom_call.1} parent=1 // pred_check
      _
    $region15: #{tpu_custom_call.1} parent=1 // pred_check_branch
      %20 = sbr.rel (0) target = $region17
    $region16: #{tpu_custom_call.1} parent=1 // pred_region
      _
    $region17: #{tpu_custom_call.1} parent=1 // pred_fallthru
      _
    // Predicated region
    $region18: #{tpu_custom_call.1} parent=1 // pred_check
      _
    $region19: #{tpu_custom_call.1} parent=1 // pred_check_branch
      %22 = sbr.rel (0) target = $region21
    $region20: #{tpu_custom_call.1} parent=1 // pred_region
      %s24 = ssub.s32 1024, 1024
      %25 = vsyncadd [#allocation3], %s24
      %s26 = sshll.u32 [#allocation2], 4
      %s27 = int_to_ptr.vmem [resolvable:$true] %s26
      %32 = dma.hbm_to_vmem [thread:$0]  %s4, 1024, %s27, [#allocation3], 128, 128, 8
    $region21: #{tpu_custom_call.1} parent=1 // pred_fallthru
      _
    // Predicated region
    $region22: #{tpu_custom_call.1} parent=1 // pred_check
      _
    $region23: #{tpu_custom_call.1} parent=1 // pred_check_branch
      %34 = sbr.rel (0) target = $region25
    $region24: #{tpu_custom_call.1} parent=1 // pred_region
      _
    $region25: #{tpu_custom_call.1} parent=1 // pred_fallthru
      _
    // Predicated region
    $region26: #{tpu_custom_call.1} parent=1 // pred_check
      _
    $region27: #{tpu_custom_call.1} parent=1 // pred_check_branch
      %36 = sbr.rel (0) target = $region29
    $region28: #{tpu_custom_call.1} parent=1 // pred_region
      %37 = dma.done [#allocation3], 1024
    $region29: #{tpu_custom_call.1} parent=1 // pred_fallthru
      _
    %v38 = vld [vmem:[%s0] sm:$0xff]
    %v39 = vld [vmem:[%s1] sm:$0xff]
    %v40 = vld [vmem:[%s1 + $0x8] sm:$0xff]
    %v41 = vld [vmem:[%s1 + $0x10] sm:$0xff]
    %v42 = vld [vmem:[%s1 + $0x18] sm:$0xff]
    %v43 = vld [vmem:[%s1 + $0x20] sm:$0xff]
    %v44 = vld [vmem:[%s1 + $0x28] sm:$0xff]
    %v45 = vld [vmem:[%s1 + $0x30] sm:$0xff]
    %v46 = vld [vmem:[%s1 + $0x38] sm:$0xff]
    %v47 = vld [vmem:[%s5] sm:$0x1]
    %v48 = vlaneseq
    %v49 = vshrl.u32 %v48, 7
    %v50 = vsub.s32 0, %v49
    %v51 = vrot.slane %v47, %v50
    %vm52 = vcmask 523264
    %v54 = vsel %vm52, %v38, 0
    %56 = vmatprep.subr.mxu0 0.0
    %57 = vmatpush1.msra.mxu0 %v39
    %58 = vmatprep.subr.mxu0 0.0
    %59 = vmatpush1.msra.mxu0 %v40
    %60 = vmatprep.subr.mxu0 0.0
    %61 = vmatpush1.msra.mxu0 %v41
    %62 = vmatprep.subr.mxu0 0.0
    %63 = vmatpush1.msra.mxu0 %v42
    %64 = vmatprep.subr.mxu0 0.0
    %65 = vmatpush1.msra.mxu0 %v43
    %66 = vmatprep.subr.mxu0 0.0
    %67 = vmatpush1.msra.mxu0 %v44
    %68 = vmatprep.subr.mxu0 0.0
    %69 = vmatpush1.msra.mxu0 %v45
    %70 = vmatprep.subr.mxu0 0.0
    %71 = vmatpush1.msra.mxu0 %v46
    %72 = vmatprep.subr.mxu0 0.0
    %73 = vmatpush1.msra.mxu0 0.0
    %74 = vmatprep.subr.mxu0 0.0
    %75 = vmatpush1.msra.mxu0 0.0
    %76 = vmatprep.subr.mxu0 0.0
    %77 = vmatpush1.msra.mxu0 0.0
    %78 = vmatprep.subr.mxu0 0.0
    %79 = vmatpush1.msra.mxu0 0.0
    %80 = vmatprep.subr.mxu0 0.0
    %81 = vmatpush1.msra.mxu0 0.0
    %82 = vmatprep.subr.mxu0 0.0
    %83 = vmatpush1.msra.mxu0 0.0
    %84 = vmatprep.subr.mxu0 0.0
    %85 = vmatpush1.msra.mxu0 0.0
    %86 = vmatprep.subr.mxu0 0.0
    %87 = vmatpush1.msra.mxu0 0.0
    %88 = vmatprep.subr.mxu0 0.0
    %89 = vmatpush1.msra.mxu0 0.0
    %90 = vmatprep.subr.mxu0 0.0
    %91 = vmatpush1.msra.mxu0 0.0
    %92 = vmatprep.subr.mxu0 0.0
    %93 = vmatpush1.msra.mxu0 0.0
    %94 = vmatprep.subr.mxu0 0.0
    %95 = vmatpush1.msra.mxu0 0.0
    %96 = vmatprep.subr.mxu0 0.0
    %97 = vmatpush1.msra.mxu0 0.0
    %98 = vmatprep.subr.mxu0 0.0
    %99 = vmatpush1.msra.mxu0 0.0
    %100 = vmatprep.subr.mxu0 0.0
    %101 = vmatpush1.msra.mxu0 0.0
    %102 = vmatprep.subr.mxu0 0.0
    %103 = vmatpush1.msra.mxu0 0.0
    %104 = vmatprep.subr.mxu0 0.0
    %105 = vmatpush1.msra.mxu0 0.0
    %106 = vmatprep.subr.mxu0 0.0
    %107 = vmatpush1.msra.mxu0 0.0
    %108 = vmatprep.subr.mxu0 0.0
    %109 = vmatpush1.msra.mxu0 0.0
    %110 = vmatprep.subr.mxu0 0.0
    %111 = vmatpush1.msra.mxu0 0.0
    %112 = vmatprep.subr.mxu0 0.0
    %113 = vmatpush1.msra.mxu0 0.0
    %114 = vmatprep.subr.mxu0 0.0
    %115 = vmatpush1.msra.mxu0 0.0
    %116 = vmatprep.subr.mxu0 0.0
    %117 = vmatpush1.msra.mxu0 0.0
    %118 = vmatprep.subr.mxu0 0.0
    %119 = vmatpush1.msra.mxu0 0.0
    %120 = vmatprep.mubr.f32.mxu0 0.0
    %121 = vmatmul.mubr.f32.gmra.mrb[0].mxu0 %v54
    %v122 = vpop.f32.mrb[0].mxu0
    %v123 = vadd.f32 %v51, %v122
    %v124 = vpop.f32.mrb[0].mxu0
    %125 = vdwg.mxu0
    %v126 = vmax.f32 %v123, 0.0
    %v127 = vld [vmem:[%s2] sm:$0xff]
    %v128 = vld [vmem:[%s2 + $0x8] sm:$0xff]
    %v129 = vld [vmem:[%s5 + $0x1] sm:$0x1]
    %v130 = vlaneseq
    %v131 = vshrl.u32 %v130, 7
    %v132 = vsub.s32 0, %v131
    %v133 = vrot.slane %v129, %v132
    %vm134 = vcmask 130048
    %v136 = vsel %vm134, %v126, 0
    %138 = vmatprep.subr.mxu0 0.0
    %139 = vmatpush1.msra.mxu0 %v127
    %140 = vmatprep.subr.mxu0 0.0
    %141 = vmatpush1.msra.mxu0 %v128
    %142 = vmatprep.subr.mxu0 0.0
    %143 = vmatpush1.msra.mxu0 0.0
    %144 = vmatprep.subr.mxu0 0.0
    %145 = vmatpush1.msra.mxu0 0.0
    %146 = vmatprep.subr.mxu0 0.0
    %147 = vmatpush1.msra.mxu0 0.0
    %148 = vmatprep.subr.mxu0 0.0
    %149 = vmatpush1.msra.mxu0 0.0
    %150 = vmatprep.subr.mxu0 0.0
    %151 = vmatpush1.msra.mxu0 0.0
    %152 = vmatprep.subr.mxu0 0.0
    %153 = vmatpush1.msra.mxu0 0.0
    %154 = vmatprep.subr.mxu0 0.0
    %155 = vmatpush1.msra.mxu0 0.0
    %156 = vmatprep.subr.mxu0 0.0
    %157 = vmatpush1.msra.mxu0 0.0
    %158 = vmatprep.subr.mxu0 0.0
    %159 = vmatpush1.msra.mxu0 0.0
    %160 = vmatprep.subr.mxu0 0.0
    %161 = vmatpush1.msra.mxu0 0.0
    %162 = vmatprep.subr.mxu0 0.0
    %163 = vmatpush1.msra.mxu0 0.0
    %164 = vmatprep.subr.mxu0 0.0
    %165 = vmatpush1.msra.mxu0 0.0
    %166 = vmatprep.subr.mxu0 0.0
    %167 = vmatpush1.msra.mxu0 0.0
    %168 = vmatprep.subr.mxu0 0.0
    %169 = vmatpush1.msra.mxu0 0.0
    %170 = vmatprep.subr.mxu0 0.0
    %171 = vmatpush1.msra.mxu0 0.0
    %172 = vmatprep.subr.mxu0 0.0
    %173 = vmatpush1.msra.mxu0 0.0
    %174 = vmatprep.subr.mxu0 0.0
    %175 = vmatpush1.msra.mxu0 0.0
    %176 = vmatprep.subr.mxu0 0.0
    %177 = vmatpush1.msra.mxu0 0.0
    %178 = vmatprep.subr.mxu0 0.0
    %179 = vmatpush1.msra.mxu0 0.0
    %180 = vmatprep.subr.mxu0 0.0
    %181 = vmatpush1.msra.mxu0 0.0
    %182 = vmatprep.subr.mxu0 0.0
    %183 = vmatpush1.msra.mxu0 0.0
    %184 = vmatprep.subr.mxu0 0.0
    %185 = vmatpush1.msra.mxu0 0.0
    %186 = vmatprep.subr.mxu0 0.0
    %187 = vmatpush1.msra.mxu0 0.0
    %188 = vmatprep.subr.mxu0 0.0
    %189 = vmatpush1.msra.mxu0 0.0
    %190 = vmatprep.subr.mxu0 0.0
    %191 = vmatpush1.msra.mxu0 0.0
    %192 = vmatprep.subr.mxu0 0.0
    %193 = vmatpush1.msra.mxu0 0.0
    %194 = vmatprep.subr.mxu0 0.0
    %195 = vmatpush1.msra.mxu0 0.0
    %196 = vmatprep.subr.mxu0 0.0
    %197 = vmatpush1.msra.mxu0 0.0
    %198 = vmatprep.subr.mxu0 0.0
    %199 = vmatpush1.msra.mxu0 0.0
    %200 = vmatprep.subr.mxu0 0.0
    %201 = vmatpush1.msra.mxu0 0.0
    %202 = vmatprep.mubr.f32.mxu0 0.0
    %203 = vmatmul.mubr.f32.gmra.mrb[0].mxu0 %v136
    %v204 = vpop.f32.mrb[0].mxu0
    %v205 = vadd.f32 %v133, %v204
    %v206 = vpop.f32.mrb[0].mxu0
    %207 = vdwg.mxu0
    %v208 = vxor.u32 %v205, 2147483648
    %v209 = vmul.f32 %v208, 1.442695
    %v210 = vpow.pop %v209
    %v211 = vadd.f32 %v210, 1.0
    %v212 = vrcp.pop %v211
    %v213 = vmul.f32 1.0, %v212
    %v214 = vadd.f32 %v213, 1.0
    %v215 = vmul.f32 %v38, %v214
    %v216 = vld [vmem:[%s3] sm:$0xff]
    %v217 = vld [vmem:[%s3 + $0x8] sm:$0xff]
    %v218 = vld [vmem:[%s3 + $0x10] sm:$0xff]
    %v219 = vld [vmem:[%s3 + $0x18] sm:$0xff]
    %v220 = vld [vmem:[%s3 + $0x20] sm:$0xff]
    %v221 = vld [vmem:[%s3 + $0x28] sm:$0xff]
    %v222 = vld [vmem:[%s3 + $0x30] sm:$0xff]
    %v223 = vld [vmem:[%s3 + $0x38] sm:$0xff]
    %v224 = vld [vmem:[%s5 + $0x2] sm:$0x1]
    %v225 = vlaneseq
    %v226 = vshrl.u32 %v225, 7
    %v227 = vsub.s32 0, %v226
    %v228 = vrot.slane %v224, %v227
    %v230 = vsel %vm52, %v215, 0
    %232 = vmatprep.subr.mxu0 0.0
    %233 = vmatpush1.msra.mxu0 %v216
    %234 = vmatprep.subr.mxu0 0.0
    %235 = vmatpush1.msra.mxu0 %v217
    %236 = vmatprep.subr.mxu0 0.0
    %237 = vmatpush1.msra.mxu0 %v218
    %238 = vmatprep.subr.mxu0 0.0
    %239 = vmatpush1.msra.mxu0 %v219
    %240 = vmatprep.subr.mxu0 0.0
    %241 = vmatpush1.msra.mxu0 %v220
    %242 = vmatprep.subr.mxu0 0.0
    %243 = vmatpush1.msra.mxu0 %v221
    %244 = vmatprep.subr.mxu0 0.0
    %245 = vmatpush1.msra.mxu0 %v222
    %246 = vmatprep.subr.mxu0 0.0
    %247 = vmatpush1.msra.mxu0 %v223
    %248 = vmatprep.subr.mxu0 0.0
    %249 = vmatpush1.msra.mxu0 0.0
    %250 = vmatprep.subr.mxu0 0.0
    %251 = vmatpush1.msra.mxu0 0.0
    %252 = vmatprep.subr.mxu0 0.0
    %253 = vmatpush1.msra.mxu0 0.0
    %254 = vmatprep.subr.mxu0 0.0
    %255 = vmatpush1.msra.mxu0 0.0
    %256 = vmatprep.subr.mxu0 0.0
    %257 = vmatpush1.msra.mxu0 0.0
    %258 = vmatprep.subr.mxu0 0.0
    %259 = vmatpush1.msra.mxu0 0.0
    %260 = vmatprep.subr.mxu0 0.0
    %261 = vmatpush1.msra.mxu0 0.0
    %262 = vmatprep.subr.mxu0 0.0
    %263 = vmatpush1.msra.mxu0 0.0
    %264 = vmatprep.subr.mxu0 0.0
    %265 = vmatpush1.msra.mxu0 0.0
    %266 = vmatprep.subr.mxu0 0.0
    %267 = vmatpush1.msra.mxu0 0.0
    %268 = vmatprep.subr.mxu0 0.0
    %269 = vmatpush1.msra.mxu0 0.0
    %270 = vmatprep.subr.mxu0 0.0
    %271 = vmatpush1.msra.mxu0 0.0
    %272 = vmatprep.subr.mxu0 0.0
    %273 = vmatpush1.msra.mxu0 0.0
    %274 = vmatprep.subr.mxu0 0.0
    %275 = vmatpush1.msra.mxu0 0.0
    %276 = vmatprep.subr.mxu0 0.0
    %277 = vmatpush1.msra.mxu0 0.0
    %278 = vmatprep.subr.mxu0 0.0
    %279 = vmatpush1.msra.mxu0 0.0
    %280 = vmatprep.subr.mxu0 0.0
    %281 = vmatpush1.msra.mxu0 0.0
    %282 = vmatprep.subr.mxu0 0.0
    %283 = vmatpush1.msra.mxu0 0.0
    %284 = vmatprep.subr.mxu0 0.0
    %285 = vmatpush1.msra.mxu0 0.0
    %286 = vmatprep.subr.mxu0 0.0
    %287 = vmatpush1.msra.mxu0 0.0
    %288 = vmatprep.subr.mxu0 0.0
    %289 = vmatpush1.msra.mxu0 0.0
    %290 = vmatprep.subr.mxu0 0.0
    %291 = vmatpush1.msra.mxu0 0.0
    %292 = vmatprep.subr.mxu0 0.0
    %293 = vmatpush1.msra.mxu0 0.0
    %294 = vmatprep.subr.mxu0 0.0
    %295 = vmatpush1.msra.mxu0 0.0
    %296 = vmatprep.mubr.f32.mxu0 0.0
    %297 = vmatmul.mubr.f32.gmra.mrb[0].mxu0 %v230
    %v298 = vpop.f32.mrb[0].mxu0
    %v299 = vadd.f32 %v228, %v298
    %v300 = vpop.f32.mrb[0].mxu0
    %301 = vdwg.mxu0
    %v302 = vmax.f32 %v299, 0.0
    %v303 = vld [vmem:[#allocation2] sm:$0xff]
    %v304 = vld [vmem:[#allocation2 + $0x8] sm:$0xff]
    %v305 = vld [vmem:[#allocation2 + $0x10] sm:$0xff]
    %v306 = vld [vmem:[#allocation2 + $0x18] sm:$0xff]
    %v307 = vld [vmem:[#allocation2 + $0x20] sm:$0xff]
    %v308 = vld [vmem:[#allocation2 + $0x28] sm:$0xff]
    %v309 = vld [vmem:[#allocation2 + $0x30] sm:$0xff]
    %v310 = vld [vmem:[#allocation2 + $0x38] sm:$0xff]
    %v311 = vld [vmem:[%s5 + $0x3] sm:$0x1]
    %v312 = vlaneseq
    %v313 = vshrl.u32 %v312, 7
    %v314 = vsub.s32 0, %v313
    %v315 = vrot.slane %v311, %v314
    %v317 = vsel %vm52, %v302, 0
    %319 = vmatprep.subr.mxu0 0.0
    %320 = vmatpush1.msra.mxu0 %v303
    %321 = vmatprep.subr.mxu0 0.0
    %322 = vmatpush1.msra.mxu0 %v304
    %323 = vmatprep.subr.mxu0 0.0
    %324 = vmatpush1.msra.mxu0 %v305
    %325 = vmatprep.subr.mxu0 0.0
    %326 = vmatpush1.msra.mxu0 %v306
    %327 = vmatprep.subr.mxu0 0.0
    %328 = vmatpush1.msra.mxu0 %v307
    %329 = vmatprep.subr.mxu0 0.0
    %330 = vmatpush1.msra.mxu0 %v308
    %331 = vmatprep.subr.mxu0 0.0
    %332 = vmatpush1.msra.mxu0 %v309
    %333 = vmatprep.subr.mxu0 0.0
    %334 = vmatpush1.msra.mxu0 %v310
    %335 = vmatprep.subr.mxu0 0.0
    %336 = vmatpush1.msra.mxu0 0.0
    %337 = vmatprep.subr.mxu0 0.0
    %338 = vmatpush1.msra.mxu0 0.0
    %339 = vmatprep.subr.mxu0 0.0
    %340 = vmatpush1.msra.mxu0 0.0
    %341 = vmatprep.subr.mxu0 0.0
    %342 = vmatpush1.msra.mxu0 0.0
    %343 = vmatprep.subr.mxu0 0.0
    %344 = vmatpush1.msra.mxu0 0.0
    %345 = vmatprep.subr.mxu0 0.0
    %346 = vmatpush1.msra.mxu0 0.0
    %347 = vmatprep.subr.mxu0 0.0
    %348 = vmatpush1.msra.mxu0 0.0
    %349 = vmatprep.subr.mxu0 0.0
    %350 = vmatpush1.msra.mxu0 0.0
    %351 = vmatprep.subr.mxu0 0.0
    %352 = vmatpush1.msra.mxu0 0.0
    %353 = vmatprep.subr.mxu0 0.0
    %354 = vmatpush1.msra.mxu0 0.0
    %355 = vmatprep.subr.mxu0 0.0
    %356 = vmatpush1.msra.mxu0 0.0
    %357 = vmatprep.subr.mxu0 0.0
    %358 = vmatpush1.msra.mxu0 0.0
    %359 = vmatprep.subr.mxu0 0.0
    %360 = vmatpush1.msra.mxu0 0.0
    %361 = vmatprep.subr.mxu0 0.0
    %362 = vmatpush1.msra.mxu0 0.0
    %363 = vmatprep.subr.mxu0 0.0
    %364 = vmatpush1.msra.mxu0 0.0
    %365 = vmatprep.subr.mxu0 0.0
    %366 = vmatpush1.msra.mxu0 0.0
    %367 = vmatprep.subr.mxu0 0.0
    %368 = vmatpush1.msra.mxu0 0.0
    %369 = vmatprep.subr.mxu0 0.0
    %370 = vmatpush1.msra.mxu0 0.0
    %371 = vmatprep.subr.mxu0 0.0
    %372 = vmatpush1.msra.mxu0 0.0
    %373 = vmatprep.subr.mxu0 0.0
    %374 = vmatpush1.msra.mxu0 0.0
    %375 = vmatprep.subr.mxu0 0.0
    %376 = vmatpush1.msra.mxu0 0.0
    %377 = vmatprep.subr.mxu0 0.0
    %378 = vmatpush1.msra.mxu0 0.0
    %379 = vmatprep.subr.mxu0 0.0
    %380 = vmatpush1.msra.mxu0 0.0
    %381 = vmatprep.subr.mxu0 0.0
    %382 = vmatpush1.msra.mxu0 0.0
    %383 = vmatprep.mubr.f32.mxu0 0.0
    %384 = vmatmul.mubr.f32.gmra.mrb[0].mxu0 %v317
    %v385 = vpop.f32.mrb[0].mxu0
    %v386 = vadd.f32 %v315, %v385
    %v387 = vpop.f32.mrb[0].mxu0
    %388 = vdwg.mxu0
    %v389 = vmax.f32 %v386, 0.0
    %390 = vst [vmem:[#allocation5] sm:$0xff] %v389
    // Predicated region
    $region30: #{tpu_custom_call.1} parent=1 // pred_check
      _
    $region31: #{tpu_custom_call.1} parent=1 // pred_check_branch
      %392 = sbr.rel (0) target = $region33
    $region32: #{tpu_custom_call.1} parent=1 // pred_region
      %s394 = ssub.s32 128, 128
      %395 = vsyncadd [#allocation4], %s394
      %s397 = sshll.u32 [#allocation5], 4
      %s398 = int_to_ptr.vmem [resolvable:$true] %s397
      %400 = dma.vmem_to_hbm [thread:$0]  %s398, 128, %s6, [#allocation4]
    $region33: #{tpu_custom_call.1} parent=1 // pred_fallthru
      _
    // Predicated region
    $region34: #{tpu_custom_call.1} parent=1 // pred_check
      _
    $region35: #{tpu_custom_call.1} parent=1 // pred_check_branch
      %402 = sbr.rel (0) target = $region37
    $region36: #{tpu_custom_call.1} parent=1 // pred_region
      %403 = dma.done [#allocation4], 128
    $region37: #{tpu_custom_call.1} parent=1 // pred_fallthru
      _
    %404 = vsyncpa [#allocation3], 1
    %405 = vsyncpa [#allocation4], 1

</llo_original>
